<compile_context>
chip_gen: v6e
topology: v6e:2x2x1
jax: 0.10.0
libtpu: 0.0.40
codegen_flags: <defaults>
</compile_context>

<pallas_src>
import functools

import jax
import jax.numpy as jnp
from jax.experimental import pallas as pl
from jax.experimental.pallas import tpu as pltpu


def _gather_kernel(ids_ref, w_hbm, out_ref, sem, *, token_tile, total_vocab):
    """One grid step: gather `token_tile` embedding rows via per-row DMAs.

    ids_ref : SMEM (N_pad,)           int32 global token ids (scalar prefetch)
    w_hbm   : HBM  (V, D)             concatenated vocab-parallel weight
    out_ref : VMEM (token_tile, D)    output tile (DMA'd into directly)
    sem     : DMA semaphores, one per in-flight row copy
    """
    base = pl.program_id(0) * token_tile
    d = out_ref.shape[1]

    # Issue all row DMAs for this tile; they run concurrently.
    for t in range(token_tile):
        tok = ids_ref[base + t]
        valid = jnp.logical_and(tok >= 0, tok < total_vocab)
        row = jnp.where(valid, tok, 0)          # clamp; row is zeroed below
        pltpu.make_async_copy(
            w_hbm.at[pl.ds(row, 1), :],
            out_ref.at[pl.ds(t, 1), :],
            sem.at[t],
        ).start()

    # Wait for each DMA; zero rows whose token is outside the total vocab
    # (reproduces `output_parallel[input_mask, :] = 0.0` on every rank).
    for t in range(token_tile):
        pltpu.make_async_copy(
            w_hbm.at[pl.ds(0, 1), :],
            out_ref.at[pl.ds(t, 1), :],
            sem.at[t],
        ).wait()

        tok = ids_ref[base + t]
        valid = jnp.logical_and(tok >= 0, tok < total_vocab)

        @pl.when(jnp.logical_not(valid))
        def _():
            out_ref[pl.ds(t, 1), :] = jnp.zeros((1, d), out_ref.dtype)


def vocab_parallel_embedding_gather(ids_flat, weight_full, *, token_tile=8):
    """Gather rows of `weight_full` at `ids_flat` (zero for out-of-vocab ids).

    ids_flat    : (N,) int32 global token ids
    weight_full : (V, D) concatenated per-rank weight partitions
    token_tile  : tokens gathered per grid step (tune 64-256 in production to
                  amortize the ~0.35 us per-step overhead; 8 keeps the demo tiny)
    returns     : (N, D) gathered embeddings
    """
    n = ids_flat.shape[0]
    total_vocab, d = weight_full.shape

    n_pad = ((n + token_tile - 1) // token_tile) * token_tile
    ids_padded = jnp.zeros((n_pad,), jnp.int32).at[:n].set(
        ids_flat.astype(jnp.int32))

    kernel = functools.partial(
        _gather_kernel, token_tile=token_tile, total_vocab=total_vocab)

    grid_spec = pltpu.PrefetchScalarGridSpec(
        num_scalar_prefetch=1,                 # ids -> SMEM, drive the DMAs
        grid=(n_pad // token_tile,),
        in_specs=[pl.BlockSpec(memory_space=pl.ANY)],   # weight stays in HBM
        out_specs=pl.BlockSpec((token_tile, d), lambda i, ids: (i, 0)),
        scratch_shapes=[pltpu.SemaphoreType.DMA((token_tile,))],
    )

    out = pl.pallas_call(
        kernel,
        out_shape=jax.ShapeDtypeStruct((n_pad, d), weight_full.dtype),
        grid_spec=grid_spec,
        compiler_params=pltpu.CompilerParams(
            dimension_semantics=("parallel",)),   # token tiles are independent
    )(ids_padded, weight_full)

    return out[:n]


def vocab_parallel_embedding(input_ids, weight_partitions):
    """Forward of VocabParallelEmbedding.

    weight_partitions: list of per-rank (V_p, D) arrays (vocab-parallel split).
    The per-rank masked gather + zeroing + all-reduce(sum) of the PyTorch
    module is computed as a single gather from the concatenated partitions,
    which is mathematically identical because the partitions are disjoint.
    """
    b, s = input_ids.shape
    weight_full = jnp.concatenate(weight_partitions, axis=0)
    d = weight_full.shape[1]
    out = vocab_parallel_embedding_gather(input_ids.reshape(-1), weight_full)
    return out.reshape(b, s, d)


def xavier_normal(key, shape, dtype=jnp.float32):
    fan_out, fan_in = shape
    std = (2.0 / (fan_in + fan_out)) ** 0.5
    return std * jax.random.normal(key, shape, dtype=dtype)


if __name__ == "__main__":
    num_embeddings = 64      # vocabulary size
    embedding_dim = 128      # hidden size
    tp_size = 2              # simulated tensor-model-parallel world size
    batch, seq = 2, 8

    key = jax.random.PRNGKey(0)
    k_w, k_ids = jax.random.split(key)

    # Master weight built once (as in _initialize_affine_weight_cpu), then
    # split along the vocab dimension into per-rank partitions.
    master_weight = xavier_normal(k_w, (num_embeddings, embedding_dim))
    vp = num_embeddings // tp_size
    weight_parts = [master_weight[r * vp:(r + 1) * vp, :] for r in range(tp_size)]

    input_ids = jax.random.randint(
        k_ids, (batch, seq), 0, num_embeddings, dtype=jnp.int32)

    out = vocab_parallel_embedding(input_ids, weight_parts)
    out = jax.block_until_ready(out)

    # Reference: plain embedding lookup over the full vocab (gather is exact).
    ref = jnp.take(master_weight, input_ids, axis=0)
    assert out.shape == (batch, seq, embedding_dim)
    assert jnp.allclose(out, ref, atol=1e-6, rtol=1e-6)

    # An id outside the total vocab is masked on every rank -> zero row
    # after the all-reduce; verify the fused kernel reproduces that.
    ids_oov = input_ids.at[0, 0].set(num_embeddings)
    out_oov = jax.block_until_ready(
        vocab_parallel_embedding(ids_oov, weight_parts))
    assert jnp.allclose(out_oov[0, 0], 0.0)
    assert jnp.allclose(out_oov[0, 1:], ref[0, 1:], atol=1e-6, rtol=1e-6)

    print("KERNEL_OK")
</pallas_src>

<mosaic_0001>
module attributes {stable_mosaic.version = 11 : i64} {
  func.func @_gather_kernel(%arg0: i32, %arg1: memref<16xi32, #tpu.memory_space<smem>>, %arg2: memref<64x128xf32, #tpu.memory_space<any>>, %arg3: memref<8x128xf32, #tpu.memory_space<vmem>>, %arg4: memref<8x!tpu.dma_semaphore, #tpu.memory_space<semaphore_mem>>) attributes {dimension_semantics = [#tpu.dimension_semantics<parallel>], iteration_bounds = array<i64: 2>, scalar_prefetch = 1 : i64, scratch_operands = 1 : i64, tpu.core_type = #tpu.core_type<tc>, window_params = [{}, {transform_indices = @transform_1, window_bounds = array<i64: 8, 128>}]} {
    %c8_i32 = arith.constant 8 : i32
    %0 = arith.muli %arg0, %c8_i32 : i32
    %c0_i32 = arith.constant 0 : i32
    %1 = arith.addi %0, %c0_i32 : i32
    %2 = arith.index_cast %1 : i32 to index
    %3 = memref.load %arg1[%2] : memref<16xi32, #tpu.memory_space<smem>>
    %c0_i32_0 = arith.constant 0 : i32
    %4 = arith.cmpi sge, %3, %c0_i32_0 : i32
    %c64_i32 = arith.constant 64 : i32
    %5 = arith.cmpi slt, %3, %c64_i32 : i32
    %6 = arith.andi %4, %5 : i1
    %c0_i32_1 = arith.constant 0 : i32
    %7 = arith.select %6, %3, %c0_i32_1 : i32
    %c0_i32_2 = arith.constant 0 : i32
    %c0_i32_3 = arith.constant 0 : i32
    %8 = tpu.memref_slice %arg2[%7, %c0_i32_3] : memref<64x128xf32, #tpu.memory_space<any>> -> memref<1x128xf32, #tpu.memory_space<any>>
    %c0_i32_4 = arith.constant 0 : i32
    %c0_i32_5 = arith.constant 0 : i32
    %9 = tpu.memref_slice %arg3[%c0_i32_4, %c0_i32_5] : memref<8x128xf32, #tpu.memory_space<vmem>> -> memref<1x128xf32, #tpu.memory_space<vmem>>
    %10 = tpu.memref_slice %arg4[%c0_i32_2] : memref<8x!tpu.dma_semaphore, #tpu.memory_space<semaphore_mem>> -> memref<1x!tpu.dma_semaphore, #tpu.memory_space<semaphore_mem>>
    %11 = tpu.memref_squeeze %10 : memref<1x!tpu.dma_semaphore, #tpu.memory_space<semaphore_mem>> -> memref<!tpu.dma_semaphore, #tpu.memory_space<semaphore_mem>>
    tpu.enqueue_dma source(%8 : memref<1x128xf32, #tpu.memory_space<any>>) target(%9 : memref<1x128xf32, #tpu.memory_space<vmem>>) target_semaphore(%11 : memref<!tpu.dma_semaphore, #tpu.memory_space<semaphore_mem>>)
    %c1_i32 = arith.constant 1 : i32
    %12 = arith.addi %0, %c1_i32 : i32
    %13 = arith.index_cast %12 : i32 to index
    %14 = memref.load %arg1[%13] : memref<16xi32, #tpu.memory_space<smem>>
    %c0_i32_6 = arith.constant 0 : i32
    %15 = arith.cmpi sge, %14, %c0_i32_6 : i32
    %c64_i32_7 = arith.constant 64 : i32
    %16 = arith.cmpi slt, %14, %c64_i32_7 : i32
    %17 = arith.andi %15, %16 : i1
    %c0_i32_8 = arith.constant 0 : i32
    %18 = arith.select %17, %14, %c0_i32_8 : i32
    %c1_i32_9 = arith.constant 1 : i32
    %c0_i32_10 = arith.constant 0 : i32
    %19 = tpu.memref_slice %arg2[%18, %c0_i32_10] : memref<64x128xf32, #tpu.memory_space<any>> -> memref<1x128xf32, #tpu.memory_space<any>>
    %c1_i32_11 = arith.constant 1 : i32
    %c0_i32_12 = arith.constant 0 : i32
    %20 = tpu.memref_slice %arg3[%c1_i32_11, %c0_i32_12] : memref<8x128xf32, #tpu.memory_space<vmem>> -> memref<1x128xf32, #tpu.memory_space<vmem>>
    %21 = tpu.memref_slice %arg4[%c1_i32_9] : memref<8x!tpu.dma_semaphore, #tpu.memory_space<semaphore_mem>> -> memref<1x!tpu.dma_semaphore, #tpu.memory_space<semaphore_mem>>
    %22 = tpu.memref_squeeze %21 : memref<1x!tpu.dma_semaphore, #tpu.memory_space<semaphore_mem>> -> memref<!tpu.dma_semaphore, #tpu.memory_space<semaphore_mem>>
    tpu.enqueue_dma source(%19 : memref<1x128xf32, #tpu.memory_space<any>>) target(%20 : memref<1x128xf32, #tpu.memory_space<vmem>>) target_semaphore(%22 : memref<!tpu.dma_semaphore, #tpu.memory_space<semaphore_mem>>)
    %c2_i32 = arith.constant 2 : i32
    %23 = arith.addi %0, %c2_i32 : i32
    %24 = arith.index_cast %23 : i32 to index
    %25 = memref.load %arg1[%24] : memref<16xi32, #tpu.memory_space<smem>>
    %c0_i32_13 = arith.constant 0 : i32
    %26 = arith.cmpi sge, %25, %c0_i32_13 : i32
    %c64_i32_14 = arith.constant 64 : i32
    %27 = arith.cmpi slt, %25, %c64_i32_14 : i32
    %28 = arith.andi %26, %27 : i1
    %c0_i32_15 = arith.constant 0 : i32
    %29 = arith.select %28, %25, %c0_i32_15 : i32
    %c2_i32_16 = arith.constant 2 : i32
    %c0_i32_17 = arith.constant 0 : i32
    %30 = tpu.memref_slice %arg2[%29, %c0_i32_17] : memref<64x128xf32, #tpu.memory_space<any>> -> memref<1x128xf32, #tpu.memory_space<any>>
    %c2_i32_18 = arith.constant 2 : i32
    %c0_i32_19 = arith.constant 0 : i32
    %31 = tpu.memref_slice %arg3[%c2_i32_18, %c0_i32_19] : memref<8x128xf32, #tpu.memory_space<vmem>> -> memref<1x128xf32, #tpu.memory_space<vmem>>
    %32 = tpu.memref_slice %arg4[%c2_i32_16] : memref<8x!tpu.dma_semaphore, #tpu.memory_space<semaphore_mem>> -> memref<1x!tpu.dma_semaphore, #tpu.memory_space<semaphore_mem>>
    %33 = tpu.memref_squeeze %32 : memref<1x!tpu.dma_semaphore, #tpu.memory_space<semaphore_mem>> -> memref<!tpu.dma_semaphore, #tpu.memory_space<semaphore_mem>>
    tpu.enqueue_dma source(%30 : memref<1x128xf32, #tpu.memory_space<any>>) target(%31 : memref<1x128xf32, #tpu.memory_space<vmem>>) target_semaphore(%33 : memref<!tpu.dma_semaphore, #tpu.memory_space<semaphore_mem>>)
    %c3_i32 = arith.constant 3 : i32
    %34 = arith.addi %0, %c3_i32 : i32
    %35 = arith.index_cast %34 : i32 to index
    %36 = memref.load %arg1[%35] : memref<16xi32, #tpu.memory_space<smem>>
    %c0_i32_20 = arith.constant 0 : i32
    %37 = arith.cmpi sge, %36, %c0_i32_20 : i32
    %c64_i32_21 = arith.constant 64 : i32
    %38 = arith.cmpi slt, %36, %c64_i32_21 : i32
    %39 = arith.andi %37, %38 : i1
    %c0_i32_22 = arith.constant 0 : i32
    %40 = arith.select %39, %36, %c0_i32_22 : i32
    %c3_i32_23 = arith.constant 3 : i32
    %c0_i32_24 = arith.constant 0 : i32
    %41 = tpu.memref_slice %arg2[%40, %c0_i32_24] : memref<64x128xf32, #tpu.memory_space<any>> -> memref<1x128xf32, #tpu.memory_space<any>>
    %c3_i32_25 = arith.constant 3 : i32
    %c0_i32_26 = arith.constant 0 : i32
    %42 = tpu.memref_slice %arg3[%c3_i32_25, %c0_i32_26] : memref<8x128xf32, #tpu.memory_space<vmem>> -> memref<1x128xf32, #tpu.memory_space<vmem>>
    %43 = tpu.memref_slice %arg4[%c3_i32_23] : memref<8x!tpu.dma_semaphore, #tpu.memory_space<semaphore_mem>> -> memref<1x!tpu.dma_semaphore, #tpu.memory_space<semaphore_mem>>
    %44 = tpu.memref_squeeze %43 : memref<1x!tpu.dma_semaphore, #tpu.memory_space<semaphore_mem>> -> memref<!tpu.dma_semaphore, #tpu.memory_space<semaphore_mem>>
    tpu.enqueue_dma source(%41 : memref<1x128xf32, #tpu.memory_space<any>>) target(%42 : memref<1x128xf32, #tpu.memory_space<vmem>>) target_semaphore(%44 : memref<!tpu.dma_semaphore, #tpu.memory_space<semaphore_mem>>)
    %c4_i32 = arith.constant 4 : i32
    %45 = arith.addi %0, %c4_i32 : i32
    %46 = arith.index_cast %45 : i32 to index
    %47 = memref.load %arg1[%46] : memref<16xi32, #tpu.memory_space<smem>>
    %c0_i32_27 = arith.constant 0 : i32
    %48 = arith.cmpi sge, %47, %c0_i32_27 : i32
    %c64_i32_28 = arith.constant 64 : i32
    %49 = arith.cmpi slt, %47, %c64_i32_28 : i32
    %50 = arith.andi %48, %49 : i1
    %c0_i32_29 = arith.constant 0 : i32
    %51 = arith.select %50, %47, %c0_i32_29 : i32
    %c4_i32_30 = arith.constant 4 : i32
    %c0_i32_31 = arith.constant 0 : i32
    %52 = tpu.memref_slice %arg2[%51, %c0_i32_31] : memref<64x128xf32, #tpu.memory_space<any>> -> memref<1x128xf32, #tpu.memory_space<any>>
    %c4_i32_32 = arith.constant 4 : i32
    %c0_i32_33 = arith.constant 0 : i32
    %53 = tpu.memref_slice %arg3[%c4_i32_32, %c0_i32_33] : memref<8x128xf32, #tpu.memory_space<vmem>> -> memref<1x128xf32, #tpu.memory_space<vmem>>
    %54 = tpu.memref_slice %arg4[%c4_i32_30] : memref<8x!tpu.dma_semaphore, #tpu.memory_space<semaphore_mem>> -> memref<1x!tpu.dma_semaphore, #tpu.memory_space<semaphore_mem>>
    %55 = tpu.memref_squeeze %54 : memref<1x!tpu.dma_semaphore, #tpu.memory_space<semaphore_mem>> -> memref<!tpu.dma_semaphore, #tpu.memory_space<semaphore_mem>>
    tpu.enqueue_dma source(%52 : memref<1x128xf32, #tpu.memory_space<any>>) target(%53 : memref<1x128xf32, #tpu.memory_space<vmem>>) target_semaphore(%55 : memref<!tpu.dma_semaphore, #tpu.memory_space<semaphore_mem>>)
    %c5_i32 = arith.constant 5 : i32
    %56 = arith.addi %0, %c5_i32 : i32
    %57 = arith.index_cast %56 : i32 to index
    %58 = memref.load %arg1[%57] : memref<16xi32, #tpu.memory_space<smem>>
    %c0_i32_34 = arith.constant 0 : i32
    %59 = arith.cmpi sge, %58, %c0_i32_34 : i32
    %c64_i32_35 = arith.constant 64 : i32
    %60 = arith.cmpi slt, %58, %c64_i32_35 : i32
    %61 = arith.andi %59, %60 : i1
    %c0_i32_36 = arith.constant 0 : i32
    %62 = arith.select %61, %58, %c0_i32_36 : i32
    %c5_i32_37 = arith.constant 5 : i32
    %c0_i32_38 = arith.constant 0 : i32
    %63 = tpu.memref_slice %arg2[%62, %c0_i32_38] : memref<64x128xf32, #tpu.memory_space<any>> -> memref<1x128xf32, #tpu.memory_space<any>>
    %c5_i32_39 = arith.constant 5 : i32
    %c0_i32_40 = arith.constant 0 : i32
    %64 = tpu.memref_slice %arg3[%c5_i32_39, %c0_i32_40] : memref<8x128xf32, #tpu.memory_space<vmem>> -> memref<1x128xf32, #tpu.memory_space<vmem>>
    %65 = tpu.memref_slice %arg4[%c5_i32_37] : memref<8x!tpu.dma_semaphore, #tpu.memory_space<semaphore_mem>> -> memref<1x!tpu.dma_semaphore, #tpu.memory_space<semaphore_mem>>
    %66 = tpu.memref_squeeze %65 : memref<1x!tpu.dma_semaphore, #tpu.memory_space<semaphore_mem>> -> memref<!tpu.dma_semaphore, #tpu.memory_space<semaphore_mem>>
    tpu.enqueue_dma source(%63 : memref<1x128xf32, #tpu.memory_space<any>>) target(%64 : memref<1x128xf32, #tpu.memory_space<vmem>>) target_semaphore(%66 : memref<!tpu.dma_semaphore, #tpu.memory_space<semaphore_mem>>)
    %c6_i32 = arith.constant 6 : i32
    %67 = arith.addi %0, %c6_i32 : i32
    %68 = arith.index_cast %67 : i32 to index
    %69 = memref.load %arg1[%68] : memref<16xi32, #tpu.memory_space<smem>>
    %c0_i32_41 = arith.constant 0 : i32
    %70 = arith.cmpi sge, %69, %c0_i32_41 : i32
    %c64_i32_42 = arith.constant 64 : i32
    %71 = arith.cmpi slt, %69, %c64_i32_42 : i32
    %72 = arith.andi %70, %71 : i1
    %c0_i32_43 = arith.constant 0 : i32
    %73 = arith.select %72, %69, %c0_i32_43 : i32
    %c6_i32_44 = arith.constant 6 : i32
    %c0_i32_45 = arith.constant 0 : i32
    %74 = tpu.memref_slice %arg2[%73, %c0_i32_45] : memref<64x128xf32, #tpu.memory_space<any>> -> memref<1x128xf32, #tpu.memory_space<any>>
    %c6_i32_46 = arith.constant 6 : i32
    %c0_i32_47 = arith.constant 0 : i32
    %75 = tpu.memref_slice %arg3[%c6_i32_46, %c0_i32_47] : memref<8x128xf32, #tpu.memory_space<vmem>> -> memref<1x128xf32, #tpu.memory_space<vmem>>
    %76 = tpu.memref_slice %arg4[%c6_i32_44] : memref<8x!tpu.dma_semaphore, #tpu.memory_space<semaphore_mem>> -> memref<1x!tpu.dma_semaphore, #tpu.memory_space<semaphore_mem>>
    %77 = tpu.memref_squeeze %76 : memref<1x!tpu.dma_semaphore, #tpu.memory_space<semaphore_mem>> -> memref<!tpu.dma_semaphore, #tpu.memory_space<semaphore_mem>>
    tpu.enqueue_dma source(%74 : memref<1x128xf32, #tpu.memory_space<any>>) target(%75 : memref<1x128xf32, #tpu.memory_space<vmem>>) target_semaphore(%77 : memref<!tpu.dma_semaphore, #tpu.memory_space<semaphore_mem>>)
    %c7_i32 = arith.constant 7 : i32
    %78 = arith.addi %0, %c7_i32 : i32
    %79 = arith.index_cast %78 : i32 to index
    %80 = memref.load %arg1[%79] : memref<16xi32, #tpu.memory_space<smem>>
    %c0_i32_48 = arith.constant 0 : i32
    %81 = arith.cmpi sge, %80, %c0_i32_48 : i32
    %c64_i32_49 = arith.constant 64 : i32
    %82 = arith.cmpi slt, %80, %c64_i32_49 : i32
    %83 = arith.andi %81, %82 : i1
    %c0_i32_50 = arith.constant 0 : i32
    %84 = arith.select %83, %80, %c0_i32_50 : i32
    %c7_i32_51 = arith.constant 7 : i32
    %c0_i32_52 = arith.constant 0 : i32
    %85 = tpu.memref_slice %arg2[%84, %c0_i32_52] : memref<64x128xf32, #tpu.memory_space<any>> -> memref<1x128xf32, #tpu.memory_space<any>>
    %c7_i32_53 = arith.constant 7 : i32
    %c0_i32_54 = arith.constant 0 : i32
    %86 = tpu.memref_slice %arg3[%c7_i32_53, %c0_i32_54] : memref<8x128xf32, #tpu.memory_space<vmem>> -> memref<1x128xf32, #tpu.memory_space<vmem>>
    %87 = tpu.memref_slice %arg4[%c7_i32_51] : memref<8x!tpu.dma_semaphore, #tpu.memory_space<semaphore_mem>> -> memref<1x!tpu.dma_semaphore, #tpu.memory_space<semaphore_mem>>
    %88 = tpu.memref_squeeze %87 : memref<1x!tpu.dma_semaphore, #tpu.memory_space<semaphore_mem>> -> memref<!tpu.dma_semaphore, #tpu.memory_space<semaphore_mem>>
    tpu.enqueue_dma source(%85 : memref<1x128xf32, #tpu.memory_space<any>>) target(%86 : memref<1x128xf32, #tpu.memory_space<vmem>>) target_semaphore(%88 : memref<!tpu.dma_semaphore, #tpu.memory_space<semaphore_mem>>)
    %c0_i32_55 = arith.constant 0 : i32
    %c0_i32_56 = arith.constant 0 : i32
    %c0_i32_57 = arith.constant 0 : i32
    %89 = tpu.memref_slice %arg2[%c0_i32_56, %c0_i32_57] : memref<64x128xf32, #tpu.memory_space<any>> -> memref<1x128xf32, #tpu.memory_space<any>>
    %c0_i32_58 = arith.constant 0 : i32
    %c0_i32_59 = arith.constant 0 : i32
    %90 = tpu.memref_slice %arg3[%c0_i32_58, %c0_i32_59] : memref<8x128xf32, #tpu.memory_space<vmem>> -> memref<1x128xf32, #tpu.memory_space<vmem>>
    %91 = tpu.memref_slice %arg4[%c0_i32_55] : memref<8x!tpu.dma_semaphore, #tpu.memory_space<semaphore_mem>> -> memref<1x!tpu.dma_semaphore, #tpu.memory_space<semaphore_mem>>
    %92 = tpu.memref_squeeze %91 : memref<1x!tpu.dma_semaphore, #tpu.memory_space<semaphore_mem>> -> memref<!tpu.dma_semaphore, #tpu.memory_space<semaphore_mem>>
    tpu.wait_dma2 semaphore(%92 : memref<!tpu.dma_semaphore, #tpu.memory_space<semaphore_mem>>) src(%89 : memref<1x128xf32, #tpu.memory_space<any>>) dst(%90 : memref<1x128xf32, #tpu.memory_space<vmem>>)
    %c0_i32_60 = arith.constant 0 : i32
    %93 = arith.addi %0, %c0_i32_60 : i32
    %94 = arith.index_cast %93 : i32 to index
    %95 = memref.load %arg1[%94] : memref<16xi32, #tpu.memory_space<smem>>
    %c0_i32_61 = arith.constant 0 : i32
    %96 = arith.cmpi sge, %95, %c0_i32_61 : i32
    %c64_i32_62 = arith.constant 64 : i32
    %97 = arith.cmpi slt, %95, %c64_i32_62 : i32
    %98 = arith.andi %96, %97 : i1
    %true = arith.constant true
    %99 = arith.xori %98, %true : i1
    %100 = arith.extui %99 : i1 to i32
    %c0_i32_63 = arith.constant 0 : i32
    %101 = arith.cmpi ne, %100, %c0_i32_63 : i32
    scf.if %101 {
      %cst = arith.constant 0.000000e+00 : f32
      %193 = vector.broadcast %cst : f32 to vector<1x128xf32>
      %c0 = arith.constant 0 : index
      %c0_134 = arith.constant 0 : index
      %194 = vector.load %arg3[%c0, %c0_134] : memref<8x128xf32, #tpu.memory_space<vmem>>, vector<1x128xf32>
      tpu.vector_store %arg3[%c0, %c0_134], %193 {strides = array<i32>} : memref<8x128xf32, #tpu.memory_space<vmem>>, vector<1x128xf32>,
    } else {
    }
    %c1_i32_64 = arith.constant 1 : i32
    %c0_i32_65 = arith.constant 0 : i32
    %c0_i32_66 = arith.constant 0 : i32
    %102 = tpu.memref_slice %arg2[%c0_i32_65, %c0_i32_66] : memref<64x128xf32, #tpu.memory_space<any>> -> memref<1x128xf32, #tpu.memory_space<any>>
    %c1_i32_67 = arith.constant 1 : i32
    %c0_i32_68 = arith.constant 0 : i32
    %103 = tpu.memref_slice %arg3[%c1_i32_67, %c0_i32_68] : memref<8x128xf32, #tpu.memory_space<vmem>> -> memref<1x128xf32, #tpu.memory_space<vmem>>
    %104 = tpu.memref_slice %arg4[%c1_i32_64] : memref<8x!tpu.dma_semaphore, #tpu.memory_space<semaphore_mem>> -> memref<1x!tpu.dma_semaphore, #tpu.memory_space<semaphore_mem>>
    %105 = tpu.memref_squeeze %104 : memref<1x!tpu.dma_semaphore, #tpu.memory_space<semaphore_mem>> -> memref<!tpu.dma_semaphore, #tpu.memory_space<semaphore_mem>>
    tpu.wait_dma2 semaphore(%105 : memref<!tpu.dma_semaphore, #tpu.memory_space<semaphore_mem>>) src(%102 : memref<1x128xf32, #tpu.memory_space<any>>) dst(%103 : memref<1x128xf32, #tpu.memory_space<vmem>>)
    %c1_i32_69 = arith.constant 1 : i32
    %106 = arith.addi %0, %c1_i32_69 : i32
    %107 = arith.index_cast %106 : i32 to index
    %108 = memref.load %arg1[%107] : memref<16xi32, #tpu.memory_space<smem>>
    %c0_i32_70 = arith.constant 0 : i32
    %109 = arith.cmpi sge, %108, %c0_i32_70 : i32
    %c64_i32_71 = arith.constant 64 : i32
    %110 = arith.cmpi slt, %108, %c64_i32_71 : i32
    %111 = arith.andi %109, %110 : i1
    %true_72 = arith.constant true
    %112 = arith.xori %111, %true_72 : i1
    %113 = arith.extui %112 : i1 to i32
    %c0_i32_73 = arith.constant 0 : i32
    %114 = arith.cmpi ne, %113, %c0_i32_73 : i32
    scf.if %114 {
      %cst = arith.constant 0.000000e+00 : f32
      %193 = vector.broadcast %cst : f32 to vector<1x128xf32>
      %c1 = arith.constant 1 : index
      %c0 = arith.constant 0 : index
      %194 = vector.load %arg3[%c1, %c0] : memref<8x128xf32, #tpu.memory_space<vmem>>, vector<1x128xf32>
      tpu.vector_store %arg3[%c1, %c0], %193 {strides = array<i32>} : memref<8x128xf32, #tpu.memory_space<vmem>>, vector<1x128xf32>,
    } else {
    }
    %c2_i32_74 = arith.constant 2 : i32
    %c0_i32_75 = arith.constant 0 : i32
    %c0_i32_76 = arith.constant 0 : i32
    %115 = tpu.memref_slice %arg2[%c0_i32_75, %c0_i32_76] : memref<64x128xf32, #tpu.memory_space<any>> -> memref<1x128xf32, #tpu.memory_space<any>>
    %c2_i32_77 = arith.constant 2 : i32
    %c0_i32_78 = arith.constant 0 : i32
    %116 = tpu.memref_slice %arg3[%c2_i32_77, %c0_i32_78] : memref<8x128xf32, #tpu.memory_space<vmem>> -> memref<1x128xf32, #tpu.memory_space<vmem>>
    %117 = tpu.memref_slice %arg4[%c2_i32_74] : memref<8x!tpu.dma_semaphore, #tpu.memory_space<semaphore_mem>> -> memref<1x!tpu.dma_semaphore, #tpu.memory_space<semaphore_mem>>
    %118 = tpu.memref_squeeze %117 : memref<1x!tpu.dma_semaphore, #tpu.memory_space<semaphore_mem>> -> memref<!tpu.dma_semaphore, #tpu.memory_space<semaphore_mem>>
    tpu.wait_dma2 semaphore(%118 : memref<!tpu.dma_semaphore, #tpu.memory_space<semaphore_mem>>) src(%115 : memref<1x128xf32, #tpu.memory_space<any>>) dst(%116 : memref<1x128xf32, #tpu.memory_space<vmem>>)
    %c2_i32_79 = arith.constant 2 : i32
    %119 = arith.addi %0, %c2_i32_79 : i32
    %120 = arith.index_cast %119 : i32 to index
    %121 = memref.load %arg1[%120] : memref<16xi32, #tpu.memory_space<smem>>
    %c0_i32_80 = arith.constant 0 : i32
    %122 = arith.cmpi sge, %121, %c0_i32_80 : i32
    %c64_i32_81 = arith.constant 64 : i32
    %123 = arith.cmpi slt, %121, %c64_i32_81 : i32
    %124 = arith.andi %122, %123 : i1
    %true_82 = arith.constant true
    %125 = arith.xori %124, %true_82 : i1
    %126 = arith.extui %125 : i1 to i32
    %c0_i32_83 = arith.constant 0 : i32
    %127 = arith.cmpi ne, %126, %c0_i32_83 : i32
    scf.if %127 {
      %cst = arith.constant 0.000000e+00 : f32
      %193 = vector.broadcast %cst : f32 to vector<1x128xf32>
      %c2 = arith.constant 2 : index
      %c0 = arith.constant 0 : index
      %194 = vector.load %arg3[%c2, %c0] : memref<8x128xf32, #tpu.memory_space<vmem>>, vector<1x128xf32>
      tpu.vector_store %arg3[%c2, %c0], %193 {strides = array<i32>} : memref<8x128xf32, #tpu.memory_space<vmem>>, vector<1x128xf32>,
    } else {
    }
    %c3_i32_84 = arith.constant 3 : i32
    %c0_i32_85 = arith.constant 0 : i32
    %c0_i32_86 = arith.constant 0 : i32
    %128 = tpu.memref_slice %arg2[%c0_i32_85, %c0_i32_86] : memref<64x128xf32, #tpu.memory_space<any>> -> memref<1x128xf32, #tpu.memory_space<any>>
    %c3_i32_87 = arith.constant 3 : i32
    %c0_i32_88 = arith.constant 0 : i32
    %129 = tpu.memref_slice %arg3[%c3_i32_87, %c0_i32_88] : memref<8x128xf32, #tpu.memory_space<vmem>> -> memref<1x128xf32, #tpu.memory_space<vmem>>
    %130 = tpu.memref_slice %arg4[%c3_i32_84] : memref<8x!tpu.dma_semaphore, #tpu.memory_space<semaphore_mem>> -> memref<1x!tpu.dma_semaphore, #tpu.memory_space<semaphore_mem>>
    %131 = tpu.memref_squeeze %130 : memref<1x!tpu.dma_semaphore, #tpu.memory_space<semaphore_mem>> -> memref<!tpu.dma_semaphore, #tpu.memory_space<semaphore_mem>>
    tpu.wait_dma2 semaphore(%131 : memref<!tpu.dma_semaphore, #tpu.memory_space<semaphore_mem>>) src(%128 : memref<1x128xf32, #tpu.memory_space<any>>) dst(%129 : memref<1x128xf32, #tpu.memory_space<vmem>>)
    %c3_i32_89 = arith.constant 3 : i32
    %132 = arith.addi %0, %c3_i32_89 : i32
    %133 = arith.index_cast %132 : i32 to index
    %134 = memref.load %arg1[%133] : memref<16xi32, #tpu.memory_space<smem>>
    %c0_i32_90 = arith.constant 0 : i32
    %135 = arith.cmpi sge, %134, %c0_i32_90 : i32
    %c64_i32_91 = arith.constant 64 : i32
    %136 = arith.cmpi slt, %134, %c64_i32_91 : i32
    %137 = arith.andi %135, %136 : i1
    %true_92 = arith.constant true
    %138 = arith.xori %137, %true_92 : i1
    %139 = arith.extui %138 : i1 to i32
    %c0_i32_93 = arith.constant 0 : i32
    %140 = arith.cmpi ne, %139, %c0_i32_93 : i32
    scf.if %140 {
      %cst = arith.constant 0.000000e+00 : f32
      %193 = vector.broadcast %cst : f32 to vector<1x128xf32>
      %c3 = arith.constant 3 : index
      %c0 = arith.constant 0 : index
      %194 = vector.load %arg3[%c3, %c0] : memref<8x128xf32, #tpu.memory_space<vmem>>, vector<1x128xf32>
      tpu.vector_store %arg3[%c3, %c0], %193 {strides = array<i32>} : memref<8x128xf32, #tpu.memory_space<vmem>>, vector<1x128xf32>,
    } else {
    }
    %c4_i32_94 = arith.constant 4 : i32
    %c0_i32_95 = arith.constant 0 : i32
    %c0_i32_96 = arith.constant 0 : i32
    %141 = tpu.memref_slice %arg2[%c0_i32_95, %c0_i32_96] : memref<64x128xf32, #tpu.memory_space<any>> -> memref<1x128xf32, #tpu.memory_space<any>>
    %c4_i32_97 = arith.constant 4 : i32
    %c0_i32_98 = arith.constant 0 : i32
    %142 = tpu.memref_slice %arg3[%c4_i32_97, %c0_i32_98] : memref<8x128xf32, #tpu.memory_space<vmem>> -> memref<1x128xf32, #tpu.memory_space<vmem>>
    %143 = tpu.memref_slice %arg4[%c4_i32_94] : memref<8x!tpu.dma_semaphore, #tpu.memory_space<semaphore_mem>> -> memref<1x!tpu.dma_semaphore, #tpu.memory_space<semaphore_mem>>
    %144 = tpu.memref_squeeze %143 : memref<1x!tpu.dma_semaphore, #tpu.memory_space<semaphore_mem>> -> memref<!tpu.dma_semaphore, #tpu.memory_space<semaphore_mem>>
    tpu.wait_dma2 semaphore(%144 : memref<!tpu.dma_semaphore, #tpu.memory_space<semaphore_mem>>) src(%141 : memref<1x128xf32, #tpu.memory_space<any>>) dst(%142 : memref<1x128xf32, #tpu.memory_space<vmem>>)
    %c4_i32_99 = arith.constant 4 : i32
    %145 = arith.addi %0, %c4_i32_99 : i32
    %146 = arith.index_cast %145 : i32 to index
    %147 = memref.load %arg1[%146] : memref<16xi32, #tpu.memory_space<smem>>
    %c0_i32_100 = arith.constant 0 : i32
    %148 = arith.cmpi sge, %147, %c0_i32_100 : i32
    %c64_i32_101 = arith.constant 64 : i32
    %149 = arith.cmpi slt, %147, %c64_i32_101 : i32
    %150 = arith.andi %148, %149 : i1
    %true_102 = arith.constant true
    %151 = arith.xori %150, %true_102 : i1
    %152 = arith.extui %151 : i1 to i32
    %c0_i32_103 = arith.constant 0 : i32
    %153 = arith.cmpi ne, %152, %c0_i32_103 : i32
    scf.if %153 {
      %cst = arith.constant 0.000000e+00 : f32
      %193 = vector.broadcast %cst : f32 to vector<1x128xf32>
      %c4 = arith.constant 4 : index
      %c0 = arith.constant 0 : index
      %194 = vector.load %arg3[%c4, %c0] : memref<8x128xf32, #tpu.memory_space<vmem>>, vector<1x128xf32>
      tpu.vector_store %arg3[%c4, %c0], %193 {strides = array<i32>} : memref<8x128xf32, #tpu.memory_space<vmem>>, vector<1x128xf32>,
    } else {
    }
    %c5_i32_104 = arith.constant 5 : i32
    %c0_i32_105 = arith.constant 0 : i32
    %c0_i32_106 = arith.constant 0 : i32
    %154 = tpu.memref_slice %arg2[%c0_i32_105, %c0_i32_106] : memref<64x128xf32, #tpu.memory_space<any>> -> memref<1x128xf32, #tpu.memory_space<any>>
    %c5_i32_107 = arith.constant 5 : i32
    %c0_i32_108 = arith.constant 0 : i32
    %155 = tpu.memref_slice %arg3[%c5_i32_107, %c0_i32_108] : memref<8x128xf32, #tpu.memory_space<vmem>> -> memref<1x128xf32, #tpu.memory_space<vmem>>
    %156 = tpu.memref_slice %arg4[%c5_i32_104] : memref<8x!tpu.dma_semaphore, #tpu.memory_space<semaphore_mem>> -> memref<1x!tpu.dma_semaphore, #tpu.memory_space<semaphore_mem>>
    %157 = tpu.memref_squeeze %156 : memref<1x!tpu.dma_semaphore, #tpu.memory_space<semaphore_mem>> -> memref<!tpu.dma_semaphore, #tpu.memory_space<semaphore_mem>>
    tpu.wait_dma2 semaphore(%157 : memref<!tpu.dma_semaphore, #tpu.memory_space<semaphore_mem>>) src(%154 : memref<1x128xf32, #tpu.memory_space<any>>) dst(%155 : memref<1x128xf32, #tpu.memory_space<vmem>>)
    %c5_i32_109 = arith.constant 5 : i32
    %158 = arith.addi %0, %c5_i32_109 : i32
    %159 = arith.index_cast %158 : i32 to index
    %160 = memref.load %arg1[%159] : memref<16xi32, #tpu.memory_space<smem>>
    %c0_i32_110 = arith.constant 0 : i32
    %161 = arith.cmpi sge, %160, %c0_i32_110 : i32
    %c64_i32_111 = arith.constant 64 : i32
    %162 = arith.cmpi slt, %160, %c64_i32_111 : i32
    %163 = arith.andi %161, %162 : i1
    %true_112 = arith.constant true
    %164 = arith.xori %163, %true_112 : i1
    %165 = arith.extui %164 : i1 to i32
    %c0_i32_113 = arith.constant 0 : i32
    %166 = arith.cmpi ne, %165, %c0_i32_113 : i32
    scf.if %166 {
      %cst = arith.constant 0.000000e+00 : f32
      %193 = vector.broadcast %cst : f32 to vector<1x128xf32>
      %c5 = arith.constant 5 : index
      %c0 = arith.constant 0 : index
      %194 = vector.load %arg3[%c5, %c0] : memref<8x128xf32, #tpu.memory_space<vmem>>, vector<1x128xf32>
      tpu.vector_store %arg3[%c5, %c0], %193 {strides = array<i32>} : memref<8x128xf32, #tpu.memory_space<vmem>>, vector<1x128xf32>,
    } else {
    }
    %c6_i32_114 = arith.constant 6 : i32
    %c0_i32_115 = arith.constant 0 : i32
    %c0_i32_116 = arith.constant 0 : i32
    %167 = tpu.memref_slice %arg2[%c0_i32_115, %c0_i32_116] : memref<64x128xf32, #tpu.memory_space<any>> -> memref<1x128xf32, #tpu.memory_space<any>>
    %c6_i32_117 = arith.constant 6 : i32
    %c0_i32_118 = arith.constant 0 : i32
    %168 = tpu.memref_slice %arg3[%c6_i32_117, %c0_i32_118] : memref<8x128xf32, #tpu.memory_space<vmem>> -> memref<1x128xf32, #tpu.memory_space<vmem>>
    %169 = tpu.memref_slice %arg4[%c6_i32_114] : memref<8x!tpu.dma_semaphore, #tpu.memory_space<semaphore_mem>> -> memref<1x!tpu.dma_semaphore, #tpu.memory_space<semaphore_mem>>
    %170 = tpu.memref_squeeze %169 : memref<1x!tpu.dma_semaphore, #tpu.memory_space<semaphore_mem>> -> memref<!tpu.dma_semaphore, #tpu.memory_space<semaphore_mem>>
    tpu.wait_dma2 semaphore(%170 : memref<!tpu.dma_semaphore, #tpu.memory_space<semaphore_mem>>) src(%167 : memref<1x128xf32, #tpu.memory_space<any>>) dst(%168 : memref<1x128xf32, #tpu.memory_space<vmem>>)
    %c6_i32_119 = arith.constant 6 : i32
    %171 = arith.addi %0, %c6_i32_119 : i32
    %172 = arith.index_cast %171 : i32 to index
    %173 = memref.load %arg1[%172] : memref<16xi32, #tpu.memory_space<smem>>
    %c0_i32_120 = arith.constant 0 : i32
    %174 = arith.cmpi sge, %173, %c0_i32_120 : i32
    %c64_i32_121 = arith.constant 64 : i32
    %175 = arith.cmpi slt, %173, %c64_i32_121 : i32
    %176 = arith.andi %174, %175 : i1
    %true_122 = arith.constant true
    %177 = arith.xori %176, %true_122 : i1
    %178 = arith.extui %177 : i1 to i32
    %c0_i32_123 = arith.constant 0 : i32
    %179 = arith.cmpi ne, %178, %c0_i32_123 : i32
    scf.if %179 {
      %cst = arith.constant 0.000000e+00 : f32
      %193 = vector.broadcast %cst : f32 to vector<1x128xf32>
      %c6 = arith.constant 6 : index
      %c0 = arith.constant 0 : index
      %194 = vector.load %arg3[%c6, %c0] : memref<8x128xf32, #tpu.memory_space<vmem>>, vector<1x128xf32>
      tpu.vector_store %arg3[%c6, %c0], %193 {strides = array<i32>} : memref<8x128xf32, #tpu.memory_space<vmem>>, vector<1x128xf32>,
    } else {
    }
    %c7_i32_124 = arith.constant 7 : i32
    %c0_i32_125 = arith.constant 0 : i32
    %c0_i32_126 = arith.constant 0 : i32
    %180 = tpu.memref_slice %arg2[%c0_i32_125, %c0_i32_126] : memref<64x128xf32, #tpu.memory_space<any>> -> memref<1x128xf32, #tpu.memory_space<any>>
    %c7_i32_127 = arith.constant 7 : i32
    %c0_i32_128 = arith.constant 0 : i32
    %181 = tpu.memref_slice %arg3[%c7_i32_127, %c0_i32_128] : memref<8x128xf32, #tpu.memory_space<vmem>> -> memref<1x128xf32, #tpu.memory_space<vmem>>
    %182 = tpu.memref_slice %arg4[%c7_i32_124] : memref<8x!tpu.dma_semaphore, #tpu.memory_space<semaphore_mem>> -> memref<1x!tpu.dma_semaphore, #tpu.memory_space<semaphore_mem>>
    %183 = tpu.memref_squeeze %182 : memref<1x!tpu.dma_semaphore, #tpu.memory_space<semaphore_mem>> -> memref<!tpu.dma_semaphore, #tpu.memory_space<semaphore_mem>>
    tpu.wait_dma2 semaphore(%183 : memref<!tpu.dma_semaphore, #tpu.memory_space<semaphore_mem>>) src(%180 : memref<1x128xf32, #tpu.memory_space<any>>) dst(%181 : memref<1x128xf32, #tpu.memory_space<vmem>>)
    %c7_i32_129 = arith.constant 7 : i32
    %184 = arith.addi %0, %c7_i32_129 : i32
    %185 = arith.index_cast %184 : i32 to index
    %186 = memref.load %arg1[%185] : memref<16xi32, #tpu.memory_space<smem>>
    %c0_i32_130 = arith.constant 0 : i32
    %187 = arith.cmpi sge, %186, %c0_i32_130 : i32
    %c64_i32_131 = arith.constant 64 : i32
    %188 = arith.cmpi slt, %186, %c64_i32_131 : i32
    %189 = arith.andi %187, %188 : i1
    %true_132 = arith.constant true
    %190 = arith.xori %189, %true_132 : i1
    %191 = arith.extui %190 : i1 to i32
    %c0_i32_133 = arith.constant 0 : i32
    %192 = arith.cmpi ne, %191, %c0_i32_133 : i32
    scf.if %192 {
      %cst = arith.constant 0.000000e+00 : f32
      %193 = vector.broadcast %cst : f32 to vector<1x128xf32>
      %c7 = arith.constant 7 : index
      %c0 = arith.constant 0 : index
      %194 = vector.load %arg3[%c7, %c0] : memref<8x128xf32, #tpu.memory_space<vmem>>, vector<1x128xf32>
      tpu.vector_store %arg3[%c7, %c0], %193 {strides = array<i32>} : memref<8x128xf32, #tpu.memory_space<vmem>>, vector<1x128xf32>,
    } else {
    }
    return
  }
  func.func @transform_1(%arg0: i32, %arg1: memref<16xi32, #tpu.memory_space<smem>>) -> (i32, i32) {
    %c0_i32 = arith.constant 0 : i32
    %c0_i32_0 = arith.constant 0 : i32
    return %arg0, %c0_i32 : i32, i32
  }
}

</mosaic_0001>

<llo_original>
// kernel: tpu_custom_call.1
$region0: #{tpu_custom_call.1}
  #allocation0 [shape = 'u32[]', space=smem, size = 0x4, offset = 0x4, fixed_abs, tag = 'smem constant byte address 0x4 - core index']
  #allocation1 [shape = 'u32[144,128]{1,0:T(1,128)}', space=vmem, size = 0x12000, scoped, tag = 'internal scratch']
  #allocation2 [shape = 's32[8]{0}', space=sflag, size = 0x20, scoped, tag = 'scratch operand']
  #allocation3 [shape = 's32[1]{0}', space=sflag, size = 0x4, scoped, tag = 'scoped memory for tpu_custom_call.1']
  #allocation4 [shape = 'u8[512]{0}', space=smem, size = 0x200, scoped, tag = 'prefetched SMEM operand 0']
  #allocation7 [shape = 's32[]', space=sflag, size = 0x4, offset = 0, fixed_abs, tag = 'sflag constant byte address 0x0 - dummy sync flag']
  #allocation8 [shape = 's32[]', space=sflag, size = 0x4, offset = 0, fixed_abs, tag = 'sflag constant byte address 0x0 - dummy sync flag']
  #allocation9 [shape = 'u32[]', space=smem, size = 0x4, offset = 0x44, fixed_abs, tag = 'smem constant byte address 0x44 - assertion arg 0']
  #allocation10 [shape = 'u32[]', space=smem, size = 0x4, offset = 0x48, fixed_abs, tag = 'smem constant byte address 0x48 - assertion arg 1']
  #allocation11 [shape = 's32[]', space=sflag, size = 0x4, offset = 0, fixed_abs, tag = 'sflag constant byte address 0x0 - dummy sync flag']
  #allocation12 [shape = 's32[]', space=sflag, size = 0x4, offset = 0, fixed_abs, tag = 'sflag constant byte address 0x0 - dummy sync flag']
  #allocation13 [shape = 's32[]', space=sflag, size = 0x4, offset = 0, fixed_abs, tag = 'sflag constant byte address 0x0 - dummy sync flag']
  #allocation14 [shape = 's32[]', space=sflag, size = 0x4, offset = 0, fixed_abs, tag = 'sflag constant byte address 0x0 - dummy sync flag']
  #allocation15 [shape = 's32[]', space=sflag, size = 0x4, offset = 0, fixed_abs, tag = 'sflag constant byte address 0x0 - dummy sync flag']
  #allocation16 [shape = 's32[]', space=sflag, size = 0x4, offset = 0, fixed_abs, tag = 'sflag constant byte address 0x0 - dummy sync flag']
  #allocation17 [shape = 's32[]', space=sflag, size = 0x4, offset = 0, fixed_abs, tag = 'sflag constant byte address 0x0 - dummy sync flag']
  #allocation18 [shape = 's32[]', space=sflag, size = 0x4, offset = 0, fixed_abs, tag = 'sflag constant byte address 0x0 - dummy sync flag']
  #allocation19 [shape = 's32[]', space=sflag, size = 0x4, offset = 0, fixed_abs, tag = 'sflag constant byte address 0x0 - dummy sync flag']
  #allocation20 [shape = 's32[]', space=sflag, size = 0x4, offset = 0, fixed_abs, tag = 'sflag constant byte address 0x0 - dummy sync flag']
  #allocation21 [shape = 's32[]', space=sflag, size = 0x4, offset = 0, fixed_abs, tag = 'sflag constant byte address 0x0 - dummy sync flag']
  #allocation22 [shape = 's32[]', space=sflag, size = 0x4, offset = 0, fixed_abs, tag = 'sflag constant byte address 0x0 - dummy sync flag']
  #allocation23 [shape = 's32[]', space=sflag, size = 0x4, offset = 0, fixed_abs, tag = 'sflag constant byte address 0x0 - dummy sync flag']
  #allocation24 [shape = 's32[]', space=sflag, size = 0x4, offset = 0, fixed_abs, tag = 'sflag constant byte address 0x0 - dummy sync flag']
  %s0 = inlined_call_operand.hbm [shape: s32[16], index: 0, kind: input, shape index: {}]
  %s1 = inlined_call_operand.hbm [shape: f32[64,128], index: 1, kind: input, shape index: {}]
  %s2 = inlined_call_operand.hbm [shape: f32[16,128], index: 2, kind: output, shape index: {}]
  %s3 = sld [smem:[#allocation0]]
  $region89: #{tpu_custom_call.1} parent=0
    _
  %s5 = ssub.s32 1, %s3
  %s6 = scalar_select 0, %s5, %s3
  %8 = dma.hbm_to_smem %s0, 16, [#allocation4], [#allocation3]
  %9 = dma.done [#allocation3], 16
  %10 = sfence
  $region1: #{tpu_custom_call.1} parent=0
    #allocation5 [shape = 'u8[8192]{0}', space=vmem, size = 0x2000, scoped, tag = 'output window, operand 0']
    #allocation6 [shape = 's32[2]{0}', space=sflag, size = 0x8, scoped, tag = 'scoped memory for tpu_custom_call.1']
    %11 = vsyncpa [#allocation6], 0
    %s12 = scalar_lea.sflag [#allocation6], 1
    %13 = vsyncpa %s12, 0
    loop: start=0, step=1, limit=3
    $region2: #{tpu_custom_call.1} parent=1 // loop_pre_header
      _
    $region3: #{tpu_custom_call.1} parent=1 // loop_header
      %s15 = sphi 0, %s19
      %p16 = scmp.ge.s32.totalorder %s15, 3
      %s24 = sphi 0, %s26
      %s27 = sphi 0, %s24
      %s37 = sphi 0, %s27
    $region4: #{tpu_custom_call.1} parent=1 // loop_header_branch
      %18 = sbr.rel (%p16) target = $region8
    $region5: #{tpu_custom_call.1} parent=1 // loop_body
      %s20 = ssub.s32 %s15, 1
      %s21 = sadd.s32 %s15, 1
      %s22 = ssub.s32 %s15, %s21
      %p23 = scmp.eq.s32.totalorder %s22, 0
      %s25 = sadd.s32 %s24, 1
      %s26 = scalar_select %p23, %s24, %s25
      %p28 = pneg %p23
      %p29 = scmp.eq.s32.totalorder %s15, 1
      %p30 = por %p28, %p29
      %p31 = scmp.ne.s32.totalorder %s24, %s27
      %p32 = scmp.eq.s32.totalorder %s15, 0
      %p33 = por %p31, %p32
      %p34 = scmp.ne.s32.totalorder %s24, %s27
      %p35 = scmp.eq.s32.totalorder %s20, 1
      %p36 = por %p34, %p35
      %p38 = scmp.ne.s32.totalorder %s27, %s37
      %p39 = scmp.eq.s32.totalorder %s20, 0
      %p40 = por %p38, %p39
      %p41 = scmp.lt.s32.totalorder %s15, 2
      // Predicated region
      $region9: #{tpu_custom_call.1} parent=5 // pred_check
        %p42 = pneg %p41
      $region10: #{tpu_custom_call.1} parent=5 // pred_check_branch
        %44 = sbr.rel (%p42) target = $region12
      $region11: #{tpu_custom_call.1} parent=5 // pred_region
        %p45 = pneg %p33
        %p46 = pneg %p30
        %s47 = sand.u32 %s24, 1
        %s48 = scalar_lea.sflag [#allocation6], %s47
        %s49 = sand.u32 %s24, 1
        %s50 = smul.addr %s49, 8
        %s51 = scalar_lea.vmem [#allocation5], %s50
        %s52 = smul.u32 %s15, 8
        %s53 = sld [smem:[#allocation4 + %s52]]
        %p54 = scmp.ge.s32.totalorder %s53, 0
        %p55 = scmp.lt.s32.totalorder %s53, 64
        %p56 = pnand %p54, %p55
        %p57 = pneg %p56
        %s58 = scalar_select %p57, %s53, 0
        %s59 = smul.addr %s58, 16
        %s60 = scalar_lea.hbm %s1, %s59
        // Predicated region
        $region13: #{tpu_custom_call.1} parent=11 // pred_check
          _
        $region14: #{tpu_custom_call.1} parent=11 // pred_check_branch
          %62 = sbr.rel target = $region16
        $region15: #{tpu_custom_call.1} parent=11 // pred_region
          %63 = sst [smem:[#allocation9]] [#allocation8]
          %64 = sst [smem:[#allocation10]] [#allocation7]
        $region16: #{tpu_custom_call.1} parent=11 // pred_fallthru
          _
        %66 = shalt.err (0)
        %s68 = sshll.u32 %s51, 4
        %s69 = int_to_ptr.vmem [resolvable:$true] %s68
        %71 = dma.hbm_to_vmem [thread:$0]  %s60, 16, %s69, [#allocation2]
        %s72 = sadd.s32 %s52, 1
        %s73 = sld [smem:[#allocation4 + %s72]]
        %p74 = scmp.ge.s32.totalorder %s73, 0
        %p75 = scmp.lt.s32.totalorder %s73, 64
        %p76 = pnand %p74, %p75
        %p77 = pneg %p76
        %s78 = scalar_select %p77, %s73, 0
        %s79 = smul.addr %s78, 16
        %s80 = scalar_lea.hbm %s1, %s79
        %s81 = scalar_lea.vmem %s51, 1 [#allocation5]
        %s82 = scalar_lea.sflag [#allocation2], 1
        // Predicated region
        $region17: #{tpu_custom_call.1} parent=11 // pred_check
          _
        $region18: #{tpu_custom_call.1} parent=11 // pred_check_branch
          %84 = sbr.rel target = $region20
        $region19: #{tpu_custom_call.1} parent=11 // pred_region
          %85 = sst [smem:[#allocation9]] [#allocation12]
          %86 = sst [smem:[#allocation10]] [#allocation11]
        $region20: #{tpu_custom_call.1} parent=11 // pred_fallthru
          _
        %88 = shalt.err (0)
        %s90 = sshll.u32 %s81, 4
        %s91 = int_to_ptr.vmem [resolvable:$true] %s90
        %93 = dma.hbm_to_vmem [thread:$0]  %s80, 16, %s91, %s82
        %s94 = sadd.s32 %s52, 2
        %s95 = sld [smem:[#allocation4 + %s94]]
        %p96 = scmp.ge.s32.totalorder %s95, 0
        %p97 = scmp.lt.s32.totalorder %s95, 64
        %p98 = pnand %p96, %p97
        %p99 = pneg %p98
        %s100 = scalar_select %p99, %s95, 0
        %s101 = smul.addr %s100, 16
        %s102 = scalar_lea.hbm %s1, %s101
        %s103 = scalar_lea.vmem %s51, 2 [#allocation5]
        %s104 = scalar_lea.sflag [#allocation2], 2
        // Predicated region
        $region21: #{tpu_custom_call.1} parent=11 // pred_check
          _
        $region22: #{tpu_custom_call.1} parent=11 // pred_check_branch
          %106 = sbr.rel target = $region24
        $region23: #{tpu_custom_call.1} parent=11 // pred_region
          %107 = sst [smem:[#allocation9]] [#allocation14]
          %108 = sst [smem:[#allocation10]] [#allocation13]
        $region24: #{tpu_custom_call.1} parent=11 // pred_fallthru
          _
        %110 = shalt.err (0)
        %s112 = sshll.u32 %s103, 4
        %s113 = int_to_ptr.vmem [resolvable:$true] %s112
        %115 = dma.hbm_to_vmem [thread:$0]  %s102, 16, %s113, %s104
        %s116 = sadd.s32 %s52, 3
        %s117 = sld [smem:[#allocation4 + %s116]]
        %p118 = scmp.ge.s32.totalorder %s117, 0
        %p119 = scmp.lt.s32.totalorder %s117, 64
        %p120 = pnand %p118, %p119
        %p121 = pneg %p120
        %s122 = scalar_select %p121, %s117, 0
        %s123 = smul.addr %s122, 16
        %s124 = scalar_lea.hbm %s1, %s123
        %s125 = scalar_lea.vmem %s51, 3 [#allocation5]
        %s126 = scalar_lea.sflag [#allocation2], 3
        // Predicated region
        $region25: #{tpu_custom_call.1} parent=11 // pred_check
          _
        $region26: #{tpu_custom_call.1} parent=11 // pred_check_branch
          %128 = sbr.rel target = $region28
        $region27: #{tpu_custom_call.1} parent=11 // pred_region
          %129 = sst [smem:[#allocation9]] [#allocation16]
          %130 = sst [smem:[#allocation10]] [#allocation15]
        $region28: #{tpu_custom_call.1} parent=11 // pred_fallthru
          _
        %132 = shalt.err (0)
        %s134 = sshll.u32 %s125, 4
        %s135 = int_to_ptr.vmem [resolvable:$true] %s134
        %137 = dma.hbm_to_vmem [thread:$0]  %s124, 16, %s135, %s126
        %s138 = sadd.s32 %s52, 4
        %s139 = sld [smem:[#allocation4 + %s138]]
        %p140 = scmp.ge.s32.totalorder %s139, 0
        %p141 = scmp.lt.s32.totalorder %s139, 64
        %p142 = pnand %p140, %p141
        %p143 = pneg %p142
        %s144 = scalar_select %p143, %s139, 0
        %s145 = smul.addr %s144, 16
        %s146 = scalar_lea.hbm %s1, %s145
        %s147 = scalar_lea.vmem %s51, 4 [#allocation5]
        %s148 = scalar_lea.sflag [#allocation2], 4
        // Predicated region
        $region29: #{tpu_custom_call.1} parent=11 // pred_check
          _
        $region30: #{tpu_custom_call.1} parent=11 // pred_check_branch
          %150 = sbr.rel target = $region32
        $region31: #{tpu_custom_call.1} parent=11 // pred_region
          %151 = sst [smem:[#allocation9]] [#allocation18]
          %152 = sst [smem:[#allocation10]] [#allocation17]
        $region32: #{tpu_custom_call.1} parent=11 // pred_fallthru
          _
        %154 = shalt.err (0)
        %s156 = sshll.u32 %s147, 4
        %s157 = int_to_ptr.vmem [resolvable:$true] %s156
        %159 = dma.hbm_to_vmem [thread:$0]  %s146, 16, %s157, %s148
        %s160 = sadd.s32 %s52, 5
        %s161 = sld [smem:[#allocation4 + %s160]]
        %p162 = scmp.ge.s32.totalorder %s161, 0
        %p163 = scmp.lt.s32.totalorder %s161, 64
        %p164 = pnand %p162, %p163
        %p165 = pneg %p164
        %s166 = scalar_select %p165, %s161, 0
        %s167 = smul.addr %s166, 16
        %s168 = scalar_lea.hbm %s1, %s167
        %s169 = scalar_lea.vmem %s51, 5 [#allocation5]
        %s170 = scalar_lea.sflag [#allocation2], 5
        // Predicated region
        $region33: #{tpu_custom_call.1} parent=11 // pred_check
          _
        $region34: #{tpu_custom_call.1} parent=11 // pred_check_branch
          %172 = sbr.rel target = $region36
        $region35: #{tpu_custom_call.1} parent=11 // pred_region
          %173 = sst [smem:[#allocation9]] [#allocation20]
          %174 = sst [smem:[#allocation10]] [#allocation19]
        $region36: #{tpu_custom_call.1} parent=11 // pred_fallthru
          _
        %176 = shalt.err (0)
        %s178 = sshll.u32 %s169, 4
        %s179 = int_to_ptr.vmem [resolvable:$true] %s178
        %181 = dma.hbm_to_vmem [thread:$0]  %s168, 16, %s179, %s170
        %s182 = sadd.s32 %s52, 6
        %s183 = sld [smem:[#allocation4 + %s182]]
        %p184 = scmp.ge.s32.totalorder %s183, 0
        %p185 = scmp.lt.s32.totalorder %s183, 64
        %p186 = pnand %p184, %p185
        %p187 = pneg %p186
        %s188 = scalar_select %p187, %s183, 0
        %s189 = smul.addr %s188, 16
        %s190 = scalar_lea.hbm %s1, %s189
        %s191 = scalar_lea.vmem %s51, 6 [#allocation5]
        %s192 = scalar_lea.sflag [#allocation2], 6
        // Predicated region
        $region37: #{tpu_custom_call.1} parent=11 // pred_check
          _
        $region38: #{tpu_custom_call.1} parent=11 // pred_check_branch
          %194 = sbr.rel target = $region40
        $region39: #{tpu_custom_call.1} parent=11 // pred_region
          %195 = sst [smem:[#allocation9]] [#allocation22]
          %196 = sst [smem:[#allocation10]] [#allocation21]
        $region40: #{tpu_custom_call.1} parent=11 // pred_fallthru
          _
        %198 = shalt.err (0)
        %s200 = sshll.u32 %s191, 4
        %s201 = int_to_ptr.vmem [resolvable:$true] %s200
        %203 = dma.hbm_to_vmem [thread:$0]  %s190, 16, %s201, %s192
        %s204 = sadd.s32 %s52, 7
        %s205 = sld [smem:[#allocation4 + %s204]]
        %p206 = scmp.ge.s32.totalorder %s205, 0
        %p207 = scmp.lt.s32.totalorder %s205, 64
        %p208 = pnand %p206, %p207
        %p209 = pneg %p208
        %s210 = scalar_select %p209, %s205, 0
        %s211 = smul.addr %s210, 16
        %s212 = scalar_lea.hbm %s1, %s211
        %s213 = scalar_lea.vmem %s51, 7 [#allocation5]
        %s214 = scalar_lea.sflag [#allocation2], 7
        // Predicated region
        $region41: #{tpu_custom_call.1} parent=11 // pred_check
          _
        $region42: #{tpu_custom_call.1} parent=11 // pred_check_branch
          %216 = sbr.rel target = $region44
        $region43: #{tpu_custom_call.1} parent=11 // pred_region
          %217 = sst [smem:[#allocation9]] [#allocation24]
          %218 = sst [smem:[#allocation10]] [#allocation23]
        $region44: #{tpu_custom_call.1} parent=11 // pred_fallthru
          _
        %220 = shalt.err (0)
        %s222 = sshll.u32 %s213, 4
        %s223 = int_to_ptr.vmem [resolvable:$true] %s222
        %225 = dma.hbm_to_vmem [thread:$0]  %s212, 16, %s223, %s214
        %s226 = smul.u32 1, 1
        %s227 = sshll.u32 %s226, 4
        %228 = dma.done [#allocation2], %s227
        %s229 = sld [smem:[#allocation4 + %s52]]
        %p230 = scmp.ge.s32.totalorder %s229, 0
        %p231 = scmp.lt.s32.totalorder %s229, 64
        %p232 = pnand %p230, %p231
        %p233 = pneg %p232
        %p234 = pneg %p233
        // Predicated region
        $region45: #{tpu_custom_call.1} parent=11 // pred_check
          _
        $region46: #{tpu_custom_call.1} parent=11 // pred_check_branch
          %236 = sbr.rel (%p233) target = $region48
        $region47: #{tpu_custom_call.1} parent=11 // pred_region
          %237 = vst [vmem:[%s51] sm:$0x1] 0.0
        $region48: #{tpu_custom_call.1} parent=11 // pred_fallthru
          _
        %s238 = sshll.u32 %s226, 4
        %239 = dma.done %s82, %s238
        %s240 = sld [smem:[#allocation4 + %s72]]
        %p241 = scmp.ge.s32.totalorder %s240, 0
        %p242 = scmp.lt.s32.totalorder %s240, 64
        %p243 = pnand %p241, %p242
        %p244 = pneg %p243
        %p245 = pneg %p244
        // Predicated region
        $region49: #{tpu_custom_call.1} parent=11 // pred_check
          _
        $region50: #{tpu_custom_call.1} parent=11 // pred_check_branch
          %247 = sbr.rel (%p244) target = $region52
        $region51: #{tpu_custom_call.1} parent=11 // pred_region
          %248 = vst [vmem:[%s51 + $0x1] sm:$0x1] 0.0
        $region52: #{tpu_custom_call.1} parent=11 // pred_fallthru
          _
        %s249 = sshll.u32 %s226, 4
        %250 = dma.done %s104, %s249
        %s251 = sld [smem:[#allocation4 + %s94]]
        %p252 = scmp.ge.s32.totalorder %s251, 0
        %p253 = scmp.lt.s32.totalorder %s251, 64
        %p254 = pnand %p252, %p253
        %p255 = pneg %p254
        %p256 = pneg %p255
        // Predicated region
        $region53: #{tpu_custom_call.1} parent=11 // pred_check
          _
        $region54: #{tpu_custom_call.1} parent=11 // pred_check_branch
          %258 = sbr.rel (%p255) target = $region56
        $region55: #{tpu_custom_call.1} parent=11 // pred_region
          %259 = vst [vmem:[%s51 + $0x2] sm:$0x1] 0.0
        $region56: #{tpu_custom_call.1} parent=11 // pred_fallthru
          _
        %s260 = sshll.u32 %s226, 4
        %261 = dma.done %s126, %s260
        %s262 = sld [smem:[#allocation4 + %s116]]
        %p263 = scmp.ge.s32.totalorder %s262, 0
        %p264 = scmp.lt.s32.totalorder %s262, 64
        %p265 = pnand %p263, %p264
        %p266 = pneg %p265
        %p267 = pneg %p266
        // Predicated region
        $region57: #{tpu_custom_call.1} parent=11 // pred_check
          _
        $region58: #{tpu_custom_call.1} parent=11 // pred_check_branch
          %269 = sbr.rel (%p266) target = $region60
        $region59: #{tpu_custom_call.1} parent=11 // pred_region
          %270 = vst [vmem:[%s51 + $0x3] sm:$0x1] 0.0
        $region60: #{tpu_custom_call.1} parent=11 // pred_fallthru
          _
        %s271 = sshll.u32 %s226, 4
        %272 = dma.done %s148, %s271
        %s273 = sld [smem:[#allocation4 + %s138]]
        %p274 = scmp.ge.s32.totalorder %s273, 0
        %p275 = scmp.lt.s32.totalorder %s273, 64
        %p276 = pnand %p274, %p275
        %p277 = pneg %p276
        %p278 = pneg %p277
        // Predicated region
        $region61: #{tpu_custom_call.1} parent=11 // pred_check
          _
        $region62: #{tpu_custom_call.1} parent=11 // pred_check_branch
          %280 = sbr.rel (%p277) target = $region64
        $region63: #{tpu_custom_call.1} parent=11 // pred_region
          %281 = vst [vmem:[%s51 + $0x4] sm:$0x1] 0.0
        $region64: #{tpu_custom_call.1} parent=11 // pred_fallthru
          _
        %s282 = sshll.u32 %s226, 4
        %283 = dma.done %s170, %s282
        %s284 = sld [smem:[#allocation4 + %s160]]
        %p285 = scmp.ge.s32.totalorder %s284, 0
        %p286 = scmp.lt.s32.totalorder %s284, 64
        %p287 = pnand %p285, %p286
        %p288 = pneg %p287
        %p289 = pneg %p288
        // Predicated region
        $region65: #{tpu_custom_call.1} parent=11 // pred_check
          _
        $region66: #{tpu_custom_call.1} parent=11 // pred_check_branch
          %291 = sbr.rel (%p288) target = $region68
        $region67: #{tpu_custom_call.1} parent=11 // pred_region
          %292 = vst [vmem:[%s51 + $0x5] sm:$0x1] 0.0
        $region68: #{tpu_custom_call.1} parent=11 // pred_fallthru
          _
        %s293 = sshll.u32 %s226, 4
        %294 = dma.done %s192, %s293
        %s295 = sld [smem:[#allocation4 + %s182]]
        %p296 = scmp.ge.s32.totalorder %s295, 0
        %p297 = scmp.lt.s32.totalorder %s295, 64
        %p298 = pnand %p296, %p297
        %p299 = pneg %p298
        %p300 = pneg %p299
        // Predicated region
        $region69: #{tpu_custom_call.1} parent=11 // pred_check
          _
        $region70: #{tpu_custom_call.1} parent=11 // pred_check_branch
          %302 = sbr.rel (%p299) target = $region72
        $region71: #{tpu_custom_call.1} parent=11 // pred_region
          %303 = vst [vmem:[%s51 + $0x6] sm:$0x1] 0.0
        $region72: #{tpu_custom_call.1} parent=11 // pred_fallthru
          _
        %s304 = sshll.u32 %s226, 4
        %305 = dma.done %s214, %s304
        %s306 = sld [smem:[#allocation4 + %s204]]
        %p307 = scmp.ge.s32.totalorder %s306, 0
        %p308 = scmp.lt.s32.totalorder %s306, 64
        %p309 = pnand %p307, %p308
        %p310 = pneg %p309
        %p311 = pneg %p310
        // Predicated region
        $region73: #{tpu_custom_call.1} parent=11 // pred_check
          _
        $region74: #{tpu_custom_call.1} parent=11 // pred_check_branch
          %313 = sbr.rel (%p310) target = $region76
        $region75: #{tpu_custom_call.1} parent=11 // pred_region
          %314 = vst [vmem:[%s51 + $0x7] sm:$0x1] 0.0
        $region76: #{tpu_custom_call.1} parent=11 // pred_fallthru
          _
        %s315 = sand.u32 %s24, 1
        %s316 = scalar_lea.sflag [#allocation6], %s315
        %s317 = sand.u32 %s24, 1
        %s318 = smul.addr %s317, 8
        %s319 = scalar_lea.vmem [#allocation5], %s318
        // Predicated region
        $region77: #{tpu_custom_call.1} parent=11 // pred_check
          %p320 = pneg %p30
        $region78: #{tpu_custom_call.1} parent=11 // pred_check_branch
          %322 = sbr.rel (%p320) target = $region80
        $region79: #{tpu_custom_call.1} parent=11 // pred_region
          %s324 = ssub.s32 128, 128
          %325 = vsyncadd %s316, %s324
          %s326 = smul.addr %s15, 128
          %s327 = scalar_lea.hbm %s2, %s326
          %s329 = sshll.u32 %s319, 4
          %s330 = int_to_ptr.vmem [resolvable:$true] %s329
          %332 = dma.vmem_to_hbm [thread:$0]  %s330, 128, %s327, %s316
        $region80: #{tpu_custom_call.1} parent=11 // pred_fallthru
          _
      $region12: #{tpu_custom_call.1} parent=5 // pred_fallthru
        _
      %p333 = scmp.le.s32.totalorder 1, %s15
      // Predicated region
      $region81: #{tpu_custom_call.1} parent=5 // pred_check
        %p334 = pneg %p333
      $region82: #{tpu_custom_call.1} parent=5 // pred_check_branch
        %336 = sbr.rel (%p334) target = $region84
      $region83: #{tpu_custom_call.1} parent=5 // pred_region
        %s337 = ssub.s32 %s15, 1
        // Predicated region
        $region85: #{tpu_custom_call.1} parent=83 // pred_check
          %p338 = pneg %p36
        $region86: #{tpu_custom_call.1} parent=83 // pred_check_branch
          %340 = sbr.rel (%p338) target = $region88
        $region87: #{tpu_custom_call.1} parent=83 // pred_region
          %s341 = sand.u32 %s27, 1
          %s342 = scalar_lea.sflag [#allocation6], %s341
          %s343 = sand.u32 %s27, 1
          %s344 = smul.addr %s343, 8
          %s345 = scalar_lea.vmem [#allocation5], %s344
          %346 = dma.done %s342, 128
        $region88: #{tpu_custom_call.1} parent=83 // pred_fallthru
          _
      $region84: #{tpu_custom_call.1} parent=5 // pred_fallthru
        _
    $region6: #{tpu_custom_call.1} parent=1 // loop_footer
      %s19 = sadd.s32 1, %s15
    $region7: #{tpu_custom_call.1} parent=1 // loop_footer_branch
      %14 = sbr.rel target = $region3
    $region8: #{tpu_custom_call.1} parent=1 // loop_exit
      _
    %347 = vsyncpa [#allocation6], 1
    %s348 = scalar_lea.sflag [#allocation6], 1
    %349 = vsyncpa %s348, 1
  %350 = vsyncmov [#allocation2]
  %s351 = vpop.sfrf %350
  %p352 = scmp.eq.s32.totalorder %s351, 0
  %p353 = pneg %p352
  %355 = shalt.err (%p353)
  %s356 = scalar_lea.sflag [#allocation2], 1
  %357 = vsyncmov %s356
  %s358 = vpop.sfrf %357
  %p359 = scmp.eq.s32.totalorder %s358, 0
  %p360 = pneg %p359
  %362 = shalt.err (%p360)
  %s363 = scalar_lea.sflag [#allocation2], 2
  %364 = vsyncmov %s363
  %s365 = vpop.sfrf %364
  %p366 = scmp.eq.s32.totalorder %s365, 0
  %p367 = pneg %p366
  %369 = shalt.err (%p367)
  %s370 = scalar_lea.sflag [#allocation2], 3
  %371 = vsyncmov %s370
  %s372 = vpop.sfrf %371
  %p373 = scmp.eq.s32.totalorder %s372, 0
  %p374 = pneg %p373
  %376 = shalt.err (%p374)
  %s377 = scalar_lea.sflag [#allocation2], 4
  %378 = vsyncmov %s377
  %s379 = vpop.sfrf %378
  %p380 = scmp.eq.s32.totalorder %s379, 0
  %p381 = pneg %p380
  %383 = shalt.err (%p381)
  %s384 = scalar_lea.sflag [#allocation2], 5
  %385 = vsyncmov %s384
  %s386 = vpop.sfrf %385
  %p387 = scmp.eq.s32.totalorder %s386, 0
  %p388 = pneg %p387
  %390 = shalt.err (%p388)
  %s391 = scalar_lea.sflag [#allocation2], 6
  %392 = vsyncmov %s391
  %s393 = vpop.sfrf %392
  %p394 = scmp.eq.s32.totalorder %s393, 0
  %p395 = pneg %p394
  %397 = shalt.err (%p395)
  %s398 = scalar_lea.sflag [#allocation2], 7
  %399 = vsyncmov %s398
  %s400 = vpop.sfrf %399
  %p401 = scmp.eq.s32.totalorder %s400, 0
  %p402 = pneg %p401
  %404 = shalt.err (%p402)

</llo_original>
